<compile_context>
chip_gen: v5e
topology: v5e:2x2
jax: 0.10.0
libtpu: 0.0.40
codegen_flags: <defaults>
</compile_context>

<pallas_src>
import jax
import jax.numpy as jnp
from jax.experimental import pallas as pl
from jax.experimental.pallas import tpu as pltpu


def make_sel_att_kernel(C, S, Cr):
    inv_s = 1.0 / float(S)

    def kernel(x_ref, w1t_ref, w2t_ref, o_ref):
        # x_ref: (C, S) one batch element, channels on sublanes, spatial on lanes.
        x = x_ref[...].astype(jnp.float32)

        # Global average pool as a single MXU matmul producing a lane-dense row:
        #   (1, S) . (C, S)^T -> (1, C)
        ones_row = jnp.full((1, S), 1.0, jnp.float32)
        pooled = jax.lax.dot_general(
            ones_row, x,
            dimension_numbers=(((1,), (1,)), ((), ())),
            preferred_element_type=jnp.float32) * inv_s          # (1, C)

        # fc1 (no bias) + ReLU:  (1, C) @ (C, Cr) -> (1, Cr)
        h = jnp.dot(pooled, w1t_ref[...], preferred_element_type=jnp.float32)
        h = jnp.maximum(h, 0.0)

        # fc2 (no bias) + sigmoid:  (1, Cr) @ (Cr, C) -> (1, C)
        y = jnp.dot(h, w2t_ref[...], preferred_element_type=jnp.float32)
        o_ref[...] = jax.nn.sigmoid(y)                           # (1, C)

    return kernel


def se_layer_att_forward(x_nchw, w1, w2):
    """x_nchw: (B, C, H, W) f32.  w1: (C//r, C), w2: (C, C//r) (torch Linear layout).

    Returns (B, C, 1, 1) f32 attention weights (matches SELayer_att.forward).
    """
    B, C, H, W = x_nchw.shape
    Cr = w1.shape[0]
    S = H * W

    x3 = x_nchw.reshape(B, C, S)          # contiguous view, no data movement
    w1t = jnp.transpose(w1)               # (C, Cr)  — tiny, done once
    w2t = jnp.transpose(w2)               # (Cr, C)

    out = pl.pallas_call(
        make_sel_att_kernel(C, S, Cr),
        grid=(B,),
        in_specs=[
            pl.BlockSpec((None, C, S), lambda b: (b, 0, 0)),   # one batch tile
            pl.BlockSpec((C, Cr), lambda b: (0, 0)),           # fc1 weight (full)
            pl.BlockSpec((Cr, C), lambda b: (0, 0)),           # fc2 weight (full)
        ],
        out_specs=pl.BlockSpec((None, 1, C), lambda b: (b, 0, 0)),  # lane-dense row
        out_shape=jax.ShapeDtypeStruct((B, 1, C), jnp.float32),
        compiler_params=pltpu.CompilerParams(
            dimension_semantics=("parallel",)),
        cost_estimate=pl.CostEstimate(
            flops=2 * B * (S * C + C * Cr + Cr * C),
            transcendentals=B * C,
            bytes_accessed=4 * (B * C * S + B * 2 * C * Cr + B * C),
        ),
    )(x3, w1t, w2t)

    return out.reshape(B, C, 1, 1)


def ref_forward(x_nchw, w1, w2):
    """Pure-JAX reference matching the PyTorch module."""
    b, c = x_nchw.shape[0], x_nchw.shape[1]
    y = jnp.mean(x_nchw, axis=(2, 3))                 # (B, C)
    y = jnp.maximum(y @ w1.T, 0.0)                    # Linear(C -> C//r), ReLU
    y = jax.nn.sigmoid(y @ w2.T)                      # Linear(C//r -> C), Sigmoid
    return y.reshape(b, c, 1, 1)


if __name__ == "__main__":
    key = jax.random.PRNGKey(0)
    B, C, H, W = 2, 64, 16, 16
    reduction = 16
    Cr = C // reduction

    k_x, k_w1, k_w2 = jax.random.split(key, 3)
    x = jax.random.normal(k_x, (B, C, H, W), jnp.float32)

    # nn.Linear default init scale: U(-1/sqrt(fan_in), 1/sqrt(fan_in)), bias=False.
    w1 = jax.random.uniform(k_w1, (Cr, C), jnp.float32, -1.0, 1.0) / jnp.sqrt(float(C))
    w2 = jax.random.uniform(k_w2, (C, Cr), jnp.float32, -1.0, 1.0) / jnp.sqrt(float(Cr))

    out = se_layer_att_forward(x, w1, w2)
    jax.block_until_ready(out)

    ref = ref_forward(x, w1, w2)
    assert out.shape == (B, C, 1, 1), out.shape
    assert jnp.allclose(out, ref, atol=1e-4, rtol=1e-4), \
        float(jnp.max(jnp.abs(out - ref)))
    print("KERNEL_OK")
</pallas_src>

<mosaic_0001>
module attributes {stable_mosaic.version = 11 : i64} {
  func.func @kernel(%arg0: i32, %arg1: memref<1x64x256xf32, #tpu.memory_space<vmem>>, %arg2: memref<64x4xf32, #tpu.memory_space<vmem>>, %arg3: memref<4x64xf32, #tpu.memory_space<vmem>>, %arg4: memref<1x1x64xf32, #tpu.memory_space<vmem>>) attributes {dimension_semantics = [#tpu.dimension_semantics<parallel>], iteration_bounds = array<i64: 2>, scalar_prefetch = 0 : i64, scratch_operands = 0 : i64, tpu.core_type = #tpu.core_type<tc>, window_params = [{transform_indices = @transform_0, window_bounds = array<i64: 1, 64, 256>}, {pipeline_mode = #tpu.pipeline_mode<synchronous>, transform_indices = @transform_1, window_bounds = array<i64: 64, 4>}, {pipeline_mode = #tpu.pipeline_mode<synchronous>, transform_indices = @transform_2, window_bounds = array<i64: 4, 64>}, {transform_indices = @transform_3, window_bounds = array<i64: 1, 1, 64>}]} {
    %c0 = arith.constant 0 : index
    %c0_0 = arith.constant 0 : index
    %c0_1 = arith.constant 0 : index
    %0 = vector.load %arg1[%c0, %c0_0, %c0_1] : memref<1x64x256xf32, #tpu.memory_space<vmem>>, vector<1x64x256xf32>
    %1 = vector.shape_cast %0 : vector<1x64x256xf32> to vector<64x256xf32>
    %cst = arith.constant 1.000000e+00 : f32
    %2 = vector.broadcast %cst : f32 to vector<1x256xf32>
    %cst_2 = arith.constant dense<0.000000e+00> : vector<1x64xf32>
    %3 = tpu.matmul %2, %1, %cst_2 {dimension_numbers = #tpu.dot_dimension_numbers<[1], [1], [0], [0], [0, 0, 1, 0], [], []>} : vector<1x256xf32>, vector<64x256xf32>, vector<1x64xf32> -> vector<1x64xf32>
    %cst_3 = arith.constant 3.906250e-03 : f32
    %4 = vector.broadcast %cst_3 : f32 to vector<1x64xf32>
    %5 = arith.mulf %3, %4 : vector<1x64xf32>
    %c0_4 = arith.constant 0 : index
    %c0_5 = arith.constant 0 : index
    %6 = vector.load %arg2[%c0_4, %c0_5] : memref<64x4xf32, #tpu.memory_space<vmem>>, vector<64x4xf32>
    %cst_6 = arith.constant dense<0.000000e+00> : vector<1x4xf32>
    %7 = tpu.matmul %5, %6, %cst_6 {dimension_numbers = #tpu.dot_dimension_numbers<[1], [0], [0], [1], [0, 0, 1, 1], [], []>} : vector<1x64xf32>, vector<64x4xf32>, vector<1x4xf32> -> vector<1x4xf32>
    %cst_7 = arith.constant 0.000000e+00 : f32
    %8 = vector.broadcast %cst_7 : f32 to vector<1x4xf32>
    %9 = arith.maximumf %7, %8 : vector<1x4xf32>
    %c0_8 = arith.constant 0 : index
    %c0_9 = arith.constant 0 : index
    %10 = vector.load %arg3[%c0_8, %c0_9] : memref<4x64xf32, #tpu.memory_space<vmem>>, vector<4x64xf32>
    %cst_10 = arith.constant dense<0.000000e+00> : vector<1x64xf32>
    %11 = tpu.matmul %9, %10, %cst_10 {dimension_numbers = #tpu.dot_dimension_numbers<[1], [0], [0], [1], [0, 0, 1, 1], [], []>} : vector<1x4xf32>, vector<4x64xf32>, vector<1x64xf32> -> vector<1x64xf32>
    %12 = arith.negf %11 : vector<1x64xf32>
    %13 = math.exp %12 : vector<1x64xf32>
    %cst_11 = arith.constant 1.000000e+00 : f32
    %14 = vector.broadcast %cst_11 : f32 to vector<1x64xf32>
    %15 = arith.addf %14, %13 : vector<1x64xf32>
    %16 = arith.divf %14, %15 : vector<1x64xf32>
    %c0_12 = arith.constant 0 : index
    %c0_13 = arith.constant 0 : index
    %c0_14 = arith.constant 0 : index
    %17 = vector.load %arg4[%c0_12, %c0_13, %c0_14] : memref<1x1x64xf32, #tpu.memory_space<vmem>>, vector<1x1x64xf32>
    %18 = vector.shape_cast %17 : vector<1x1x64xf32> to vector<1x64xf32>
    %19 = vector.shape_cast %16 : vector<1x64xf32> to vector<1x1x64xf32>
    tpu.vector_store %arg4[%c0_12, %c0_13, %c0_14], %19 {strides = array<i32>} : memref<1x1x64xf32, #tpu.memory_space<vmem>>, vector<1x1x64xf32>,
    return
  }
  func.func @transform_0(%arg0: i32) -> (i32, i32, i32) {
    %c0_i32 = arith.constant 0 : i32
    %c0_i32_0 = arith.constant 0 : i32
    %c0_i32_1 = arith.constant 0 : i32
    return %arg0, %c0_i32, %c0_i32_0 : i32, i32, i32
  }
  func.func @transform_1(%arg0: i32) -> (i32, i32) {
    %c0_i32 = arith.constant 0 : i32
    %c0_i32_0 = arith.constant 0 : i32
    %c0_i32_1 = arith.constant 0 : i32
    return %c0_i32, %c0_i32_0 : i32, i32
  }
  func.func @transform_2(%arg0: i32) -> (i32, i32) {
    %c0_i32 = arith.constant 0 : i32
    %c0_i32_0 = arith.constant 0 : i32
    %c0_i32_1 = arith.constant 0 : i32
    return %c0_i32, %c0_i32_0 : i32, i32
  }
  func.func @transform_3(%arg0: i32) -> (i32, i32, i32) {
    %c0_i32 = arith.constant 0 : i32
    %c0_i32_0 = arith.constant 0 : i32
    %c0_i32_1 = arith.constant 0 : i32
    return %arg0, %c0_i32, %c0_i32_0 : i32, i32, i32
  }
}

</mosaic_0001>

<llo_original>
// kernel: tpu_custom_call.1
$region0: #{tpu_custom_call.1}
  #allocation0 [shape = 'u32[]', space=smem, size = 0x4, offset = 0x4, fixed_abs, tag = 'smem constant byte address 0x4 - core index']
  #allocation1 [shape = 'u32[72,128]{1,0:T(1,128)}', space=vmem, size = 0x9000, scoped, tag = 'internal scratch']
  %s0 = inlined_call_operand.hbm [shape: f32[2,64,256], index: 0, kind: input, shape index: {}]
  %s1 = inlined_call_operand.vmem [shape: f32[64,4], index: 1, kind: input, shape index: {}]
  %s2 = inlined_call_operand.vmem [shape: f32[4,64], index: 2, kind: input, shape index: {}]
  %s3 = inlined_call_operand.hbm [shape: f32[2,1,64], index: 3, kind: output, shape index: {}]
  %s4 = sld [smem:[#allocation0]]
  $region49: #{tpu_custom_call.1} parent=0
    _
  %s6 = ssub.s32 1, %s4
  %s7 = scalar_select 0, %s6, %s4
  $region1: #{tpu_custom_call.1} parent=0
    #allocation2 [shape = 'u8[131072]{0}', space=vmem, size = 0x20000, scoped, tag = 'input window, operand 0']
    #allocation3 [shape = 's32[2]{0}', space=sflag, size = 0x8, scoped, tag = 'scoped memory for tpu_custom_call.1']
    #allocation4 [shape = 's32[2]{0}', space=sflag, size = 0x8, scoped, tag = 'scoped memory for tpu_custom_call.1']
    #allocation5 [shape = 'u8[1024]{0}', space=vmem, size = 0x400, scoped, tag = 'output window, operand 0']
    %8 = vsyncpa [#allocation3], 0
    %s9 = scalar_lea.sflag [#allocation3], 1
    %10 = vsyncpa %s9, 0
    %11 = vsyncpa [#allocation4], 0
    %s12 = scalar_lea.sflag [#allocation4], 1
    %13 = vsyncpa %s12, 0
    loop: start=0, step=1, limit=4
    $region2: #{tpu_custom_call.1} parent=1 // loop_pre_header
      _
    $region3: #{tpu_custom_call.1} parent=1 // loop_header
      %s15 = sphi 0, %s19
      %p16 = scmp.ge.s32.totalorder %s15, 4
      %s25 = sphi 0, %s27
      %s28 = sphi 0, %s25
      %s29 = sphi 0, %s28
      %s45 = sphi 0, %s29
      %s49 = sphi 0, %s49
      %s51 = sphi 0, %s49
      %s52 = sphi 0, %s51
      %s66 = sphi 0, %s52
      %s70 = sphi 0, %s70
      %s72 = sphi 0, %s70
      %s73 = sphi 0, %s72
      %s87 = sphi 0, %s73
      %s93 = sphi 0, %s95
      %s96 = sphi 0, %s93
      %s97 = sphi 0, %s96
      %s113 = sphi 0, %s97
    $region4: #{tpu_custom_call.1} parent=1 // loop_header_branch
      %18 = sbr.rel (%p16) target = $region8
    $region5: #{tpu_custom_call.1} parent=1 // loop_body
      %s20 = ssub.s32 %s15, 1
      %s21 = ssub.s32 %s15, 2
      %s22 = sadd.s32 %s15, 1
      %s23 = ssub.s32 %s15, %s22
      %p24 = scmp.eq.s32.totalorder %s23, 0
      %s26 = sadd.s32 %s25, 1
      %s27 = scalar_select %p24, %s25, %s26
      %p30 = pneg %p24
      %p31 = scmp.eq.s32.totalorder %s15, 1
      %p32 = por %p30, %p31
      %p33 = scmp.ne.s32.totalorder %s25, %s28
      %p34 = scmp.eq.s32.totalorder %s15, 0
      %p35 = por %p33, %p34
      %p36 = scmp.ne.s32.totalorder %s25, %s28
      %p37 = scmp.eq.s32.totalorder %s20, 1
      %p38 = por %p36, %p37
      %p39 = scmp.ne.s32.totalorder %s28, %s29
      %p40 = scmp.eq.s32.totalorder %s20, 0
      %p41 = por %p39, %p40
      %p42 = scmp.ne.s32.totalorder %s28, %s29
      %p43 = scmp.eq.s32.totalorder %s21, 1
      %p44 = por %p42, %p43
      %p46 = scmp.ne.s32.totalorder %s29, %s45
      %p47 = scmp.eq.s32.totalorder %s21, 0
      %p48 = por %p46, %p47
      %s50 = sadd.s32 %s49, 1
      %p53 = scmp.eq.s32.totalorder %s15, 1
      %p54 = scmp.ne.s32.totalorder %s49, %s51
      %p55 = scmp.eq.s32.totalorder %s15, 0
      %p56 = por %p54, %p55
      %p57 = scmp.ne.s32.totalorder %s49, %s51
      %p58 = scmp.eq.s32.totalorder %s20, 1
      %p59 = por %p57, %p58
      %p60 = scmp.ne.s32.totalorder %s51, %s52
      %p61 = scmp.eq.s32.totalorder %s20, 0
      %p62 = por %p60, %p61
      %p63 = scmp.ne.s32.totalorder %s51, %s52
      %p64 = scmp.eq.s32.totalorder %s21, 1
      %p65 = por %p63, %p64
      %p67 = scmp.ne.s32.totalorder %s52, %s66
      %p68 = scmp.eq.s32.totalorder %s21, 0
      %p69 = por %p67, %p68
      %s71 = sadd.s32 %s70, 1
      %p74 = scmp.eq.s32.totalorder %s15, 1
      %p75 = scmp.ne.s32.totalorder %s70, %s72
      %p76 = scmp.eq.s32.totalorder %s15, 0
      %p77 = por %p75, %p76
      %p78 = scmp.ne.s32.totalorder %s70, %s72
      %p79 = scmp.eq.s32.totalorder %s20, 1
      %p80 = por %p78, %p79
      %p81 = scmp.ne.s32.totalorder %s72, %s73
      %p82 = scmp.eq.s32.totalorder %s20, 0
      %p83 = por %p81, %p82
      %p84 = scmp.ne.s32.totalorder %s72, %s73
      %p85 = scmp.eq.s32.totalorder %s21, 1
      %p86 = por %p84, %p85
      %p88 = scmp.ne.s32.totalorder %s73, %s87
      %p89 = scmp.eq.s32.totalorder %s21, 0
      %p90 = por %p88, %p89
      %s91 = ssub.s32 %s15, %s22
      %p92 = scmp.eq.s32.totalorder %s91, 0
      %s94 = sadd.s32 %s93, 1
      %s95 = scalar_select %p92, %s93, %s94
      %p98 = pneg %p92
      %p99 = scmp.eq.s32.totalorder %s15, 1
      %p100 = por %p98, %p99
      %p101 = scmp.ne.s32.totalorder %s93, %s96
      %p102 = scmp.eq.s32.totalorder %s15, 0
      %p103 = por %p101, %p102
      %p104 = scmp.ne.s32.totalorder %s93, %s96
      %p105 = scmp.eq.s32.totalorder %s20, 1
      %p106 = por %p104, %p105
      %p107 = scmp.ne.s32.totalorder %s96, %s97
      %p108 = scmp.eq.s32.totalorder %s20, 0
      %p109 = por %p107, %p108
      %p110 = scmp.ne.s32.totalorder %s96, %s97
      %p111 = scmp.eq.s32.totalorder %s21, 1
      %p112 = por %p110, %p111
      %p114 = scmp.ne.s32.totalorder %s97, %s113
      %p115 = scmp.eq.s32.totalorder %s21, 0
      %p116 = por %p114, %p115
      %p117 = scmp.le.s32.totalorder 1, %s15
      %p118 = scmp.lt.s32.totalorder %s15, 3
      %p119 = pnand %p117, %p118
      %p120 = pneg %p119
      // Predicated region
      $region9: #{tpu_custom_call.1} parent=5 // pred_check
        _
      $region10: #{tpu_custom_call.1} parent=5 // pred_check_branch
        %122 = sbr.rel (%p119) target = $region12
      $region11: #{tpu_custom_call.1} parent=5 // pred_region
        %s123 = ssub.s32 %s15, 1
        // Predicated region
        $region13: #{tpu_custom_call.1} parent=11 // pred_check
          %p124 = pneg %p62
        $region14: #{tpu_custom_call.1} parent=11 // pred_check_branch
          %126 = sbr.rel (%p124) target = $region16
        $region15: #{tpu_custom_call.1} parent=11 // pred_region
          _
        $region16: #{tpu_custom_call.1} parent=11 // pred_fallthru
          _
        // Predicated region
        $region17: #{tpu_custom_call.1} parent=11 // pred_check
          %p127 = pneg %p83
        $region18: #{tpu_custom_call.1} parent=11 // pred_check_branch
          %129 = sbr.rel (%p127) target = $region20
        $region19: #{tpu_custom_call.1} parent=11 // pred_region
          _
        $region20: #{tpu_custom_call.1} parent=11 // pred_fallthru
          _
      $region12: #{tpu_custom_call.1} parent=5 // pred_fallthru
        _
      %p130 = scmp.lt.s32.totalorder %s15, 2
      // Predicated region
      $region21: #{tpu_custom_call.1} parent=5 // pred_check
        %p131 = pneg %p130
      $region22: #{tpu_custom_call.1} parent=5 // pred_check_branch
        %133 = sbr.rel (%p131) target = $region24
      $region23: #{tpu_custom_call.1} parent=5 // pred_region
        // Predicated region
        $region25: #{tpu_custom_call.1} parent=23 // pred_check
          %p134 = pneg %p35
        $region26: #{tpu_custom_call.1} parent=23 // pred_check_branch
          %136 = sbr.rel (%p134) target = $region28
        $region27: #{tpu_custom_call.1} parent=23 // pred_region
          %s137 = sand.u32 %s25, 1
          %s138 = scalar_lea.sflag [#allocation3], %s137
          %s139 = sand.u32 %s25, 1
          %s140 = smul.addr %s139, 128
          %s141 = scalar_lea.vmem [#allocation2], %s140
          %143 = vsyncadd %s138, 0
          %s144 = smul.addr %s15, 16
          %s145 = smul.addr %s144, 8
          %s146 = scalar_lea.hbm %s0, %s145
          %s147 = sshll.u32 %s146, 4
          %s148 = int_to_ptr.hbm [resolvable:$true] %s147
          %s149 = sshll.u32 %s141, 4
          %s150 = int_to_ptr.vmem [resolvable:$true] %s149
          %155 = dma.hbm_to_vmem [thread:$0]  %s148, 2048, %s150, %s138, 256, 256, 16
        $region28: #{tpu_custom_call.1} parent=23 // pred_fallthru
          _
      $region24: #{tpu_custom_call.1} parent=5 // pred_fallthru
        _
      %p156 = scmp.le.s32.totalorder 1, %s15
      %p157 = scmp.lt.s32.totalorder %s15, 3
      %p158 = pnand %p156, %p157
      %p159 = pneg %p158
      // Predicated region
      $region29: #{tpu_custom_call.1} parent=5 // pred_check
        _
      $region30: #{tpu_custom_call.1} parent=5 // pred_check_branch
        %161 = sbr.rel (%p158) target = $region32
      $region31: #{tpu_custom_call.1} parent=5 // pred_region
        %s162 = ssub.s32 %s15, 1
        %s163 = sand.u32 %s28, 1
        %s164 = scalar_lea.sflag [#allocation3], %s163
        %s165 = sand.u32 %s28, 1
        %s166 = smul.addr %s165, 128
        %s167 = scalar_lea.vmem [#allocation2], %s166
        // Predicated region
        $region33: #{tpu_custom_call.1} parent=31 // pred_check
          %p168 = pneg %p41
        $region34: #{tpu_custom_call.1} parent=31 // pred_check_branch
          %170 = sbr.rel (%p168) target = $region36
        $region35: #{tpu_custom_call.1} parent=31 // pred_region
          %172 = dma.done %s164, 2048
        $region36: #{tpu_custom_call.1} parent=31 // pred_fallthru
          _
        %s173 = sand.u32 %s28, 1
        %s174 = scalar_lea.sflag [#allocation3], %s173
        %s175 = sand.u32 %s28, 1
        %s176 = smul.addr %s175, 128
        %s177 = scalar_lea.vmem [#allocation2], %s176
        %p178 = pneg %p41
        %p179 = pneg %p38
        %p180 = pneg %p62
        %p181 = pneg %p59
        %p182 = pneg %p83
        %p183 = pneg %p80
        %p184 = pneg %p109
        %p185 = pneg %p106
        %s186 = sand.u32 %s96, 1
        %s187 = scalar_lea.sflag [#allocation4], %s186
        %s188 = sand.u32 %s96, 1
        %s189 = scalar_lea.vmem [#allocation5], %s188
        %v190 = vld [vmem:[%s167] sm:$0xff]
        %v191 = vld [vmem:[%s167 + $0x8] sm:$0xff]
        %v192 = vld [vmem:[%s167 + $0x10] sm:$0xff]
        %v193 = vld [vmem:[%s167 + $0x18] sm:$0xff]
        %v194 = vld [vmem:[%s167 + $0x20] sm:$0xff]
        %v195 = vld [vmem:[%s167 + $0x28] sm:$0xff]
        %v196 = vld [vmem:[%s167 + $0x30] sm:$0xff]
        %v197 = vld [vmem:[%s167 + $0x38] sm:$0xff]
        %v198 = vld [vmem:[%s167 + $0x40] sm:$0xff]
        %v199 = vld [vmem:[%s167 + $0x48] sm:$0xff]
        %v200 = vld [vmem:[%s167 + $0x50] sm:$0xff]
        %v201 = vld [vmem:[%s167 + $0x58] sm:$0xff]
        %v202 = vld [vmem:[%s167 + $0x60] sm:$0xff]
        %v203 = vld [vmem:[%s167 + $0x68] sm:$0xff]
        %v204 = vld [vmem:[%s167 + $0x70] sm:$0xff]
        %v205 = vld [vmem:[%s167 + $0x78] sm:$0xff]
        %206 = vmatpush.xpose.msra.mxu0 0.0
        %207 = vmatpush.xpose.msra.mxu0 0.0
        %208 = vmatpush.xpose.msra.mxu0 0.0
        %209 = vmatpush.xpose.msra.mxu0 0.0
        %210 = vmatpush.xpose.msra.mxu0 0.0
        %211 = vmatpush.xpose.msra.mxu0 0.0
        %212 = vmatpush.xpose.msra.mxu0 0.0
        %213 = vmatpush.xpose.msra.mxu0 0.0
        %214 = vmatpush.xpose.msra.mxu0 %v204
        %215 = vmatpush.xpose.msra.mxu0 %v202
        %216 = vmatpush.xpose.msra.mxu0 %v200
        %217 = vmatpush.xpose.msra.mxu0 %v198
        %218 = vmatpush.xpose.msra.mxu0 %v196
        %219 = vmatpush.xpose.msra.mxu0 %v194
        %220 = vmatpush.xpose.msra.mxu0 %v192
        %221 = vmatpush.xpose.msra.mxu0 %v190
        %222 = vmatmul.f32.gmra.mxu0 1.0
        %v223 = vpop.f32.mrf.mxu0
        %v224 = vadd.f32 0.0, %v223
        %225 = vdwg.mxu0
        %226 = vmatpush.xpose.msra.mxu0 0.0
        %227 = vmatpush.xpose.msra.mxu0 0.0
        %228 = vmatpush.xpose.msra.mxu0 0.0
        %229 = vmatpush.xpose.msra.mxu0 0.0
        %230 = vmatpush.xpose.msra.mxu0 0.0
        %231 = vmatpush.xpose.msra.mxu0 0.0
        %232 = vmatpush.xpose.msra.mxu0 0.0
        %233 = vmatpush.xpose.msra.mxu0 0.0
        %234 = vmatpush.xpose.msra.mxu0 %v205
        %235 = vmatpush.xpose.msra.mxu0 %v203
        %236 = vmatpush.xpose.msra.mxu0 %v201
        %237 = vmatpush.xpose.msra.mxu0 %v199
        %238 = vmatpush.xpose.msra.mxu0 %v197
        %239 = vmatpush.xpose.msra.mxu0 %v195
        %240 = vmatpush.xpose.msra.mxu0 %v193
        %241 = vmatpush.xpose.msra.mxu0 %v191
        %242 = vmatmul.f32.gmra.mxu0 1.0
        %v243 = vpop.f32.mrf.mxu0
        %v244 = vadd.f32 %v224, %v243
        %245 = vdwg.mxu0
        %v246 = vmul.f32 %v244, 0.00390625
        %v247 = vld [vmem:[%s1] sm:$0xff]
        %v248 = vld [vmem:[%s1 + $0x8] sm:$0xff]
        %v249 = vld [vmem:[%s1 + $0x10] sm:$0xff]
        %v250 = vld [vmem:[%s1 + $0x18] sm:$0xff]
        %v251 = vld [vmem:[%s1 + $0x20] sm:$0xff]
        %v252 = vld [vmem:[%s1 + $0x28] sm:$0xff]
        %v253 = vld [vmem:[%s1 + $0x30] sm:$0xff]
        %v254 = vld [vmem:[%s1 + $0x38] sm:$0xff]
        %vm255 = vcmask 523264
        %v257 = vsel %vm255, %v246, 0
        %259 = vmatpush.msra.mxu0 0.0
        %260 = vmatpush.msra.mxu0 0.0
        %261 = vmatpush.msra.mxu0 0.0
        %262 = vmatpush.msra.mxu0 0.0
        %263 = vmatpush.msra.mxu0 0.0
        %264 = vmatpush.msra.mxu0 0.0
        %265 = vmatpush.msra.mxu0 0.0
        %266 = vmatpush.msra.mxu0 0.0
        %267 = vmatpush.msra.mxu0 %v254
        %268 = vmatpush.msra.mxu0 %v253
        %269 = vmatpush.msra.mxu0 %v252
        %270 = vmatpush.msra.mxu0 %v251
        %271 = vmatpush.msra.mxu0 %v250
        %272 = vmatpush.msra.mxu0 %v249
        %273 = vmatpush.msra.mxu0 %v248
        %274 = vmatpush.msra.mxu0 %v247
        %275 = vmatmul.f32.gmra.mxu0 %v257
        %v276 = vpop.f32.mrf.mxu0
        %v277 = vadd.f32 0.0, %v276
        %278 = vdwg.mxu0
        %v279 = vmax.f32 %v277, 0.0
        %v280 = vld [vmem:[%s2] sm:$0xf]
        %vm281 = vcmask 31744
        %v283 = vsel %vm281, %v279, 0
        %vm285 = vcmask 1043456
        %v287 = vsel %vm285, %v280, 0
        %289 = vmatpush.msra.mxu0 0.0
        %290 = vmatpush.msra.mxu0 0.0
        %291 = vmatpush.msra.mxu0 0.0
        %292 = vmatpush.msra.mxu0 0.0
        %293 = vmatpush.msra.mxu0 0.0
        %294 = vmatpush.msra.mxu0 0.0
        %295 = vmatpush.msra.mxu0 0.0
        %296 = vmatpush.msra.mxu0 0.0
        %297 = vmatpush.msra.mxu0 0.0
        %298 = vmatpush.msra.mxu0 0.0
        %299 = vmatpush.msra.mxu0 0.0
        %300 = vmatpush.msra.mxu0 0.0
        %301 = vmatpush.msra.mxu0 0.0
        %302 = vmatpush.msra.mxu0 0.0
        %303 = vmatpush.msra.mxu0 0.0
        %304 = vmatpush.msra.mxu0 %v287
        %305 = vmatmul.f32.gmra.mxu0 %v283
        %v306 = vpop.f32.mrf.mxu0
        %v307 = vadd.f32 0.0, %v306
        %308 = vdwg.mxu0
        %v309 = vxor.u32 %v307, 2147483648
        %v310 = vmul.f32 %v309, 1.442695
        %v311 = vpow.pop %v310
        %v312 = vadd.f32 %v311, 1.0
        %v313 = vrcp.pop %v312
        %v314 = vmul.f32 %v312, %v313
        %v315 = vsub.f32 1.0, %v314
        %v316 = vmul.f32 %v313, %v315
        %v317 = vadd.f32 %v313, %v316
        %vm318 = vweird.f32 %v312
        %vm319 = vweird.f32 %v313
        %vm320 = vmor %vm318, %vm319
        %v321 = vsel %vm320, %v313, %v317
        %v322 = vand.u32 2147483647, %v312
        %vm323 = vcmp.eq.f32.partialorder %v322, 8.507059e+37
        %v324 = vand.u32 %v312, 2147483648
        %v325 = vor.u32 1.1754944e-38, %v324
        %v326 = vsel %vm323, %v325, %v321
        %v327 = vmul.f32 1.0, %v326
        %vm328 = vcmask 516096
        %329 = vst.msk [vmem:[%s189] sm:$0x1] %vm328, %v327
        %s330 = sand.u32 %s96, 1
        %s331 = scalar_lea.sflag [#allocation4], %s330
        %s332 = sand.u32 %s96, 1
        %s333 = scalar_lea.vmem [#allocation5], %s332
        // Predicated region
        $region37: #{tpu_custom_call.1} parent=31 // pred_check
          %p334 = pneg %p106
        $region38: #{tpu_custom_call.1} parent=31 // pred_check_branch
          %336 = sbr.rel (%p334) target = $region40
        $region39: #{tpu_custom_call.1} parent=31 // pred_region
          %338 = vsyncadd %s331, 0
          %s339 = scalar_lea.hbm %s3, %s20
          %s341 = sshll.u32 %s333, 4
          %s342 = int_to_ptr.vmem [resolvable:$true] %s341
          %s343 = sshll.u32 %s339, 4
          %s344 = int_to_ptr.hbm [resolvable:$true] %s343
          %346 = dma.vmem_to_hbm [thread:$0]  %s342, 16, %s344, %s331
        $region40: #{tpu_custom_call.1} parent=31 // pred_fallthru
          _
      $region32: #{tpu_custom_call.1} parent=5 // pred_fallthru
        _
      %p347 = scmp.le.s32.totalorder 2, %s15
      // Predicated region
      $region41: #{tpu_custom_call.1} parent=5 // pred_check
        %p348 = pneg %p347
      $region42: #{tpu_custom_call.1} parent=5 // pred_check_branch
        %350 = sbr.rel (%p348) target = $region44
      $region43: #{tpu_custom_call.1} parent=5 // pred_region
        %s351 = ssub.s32 %s15, 2
        // Predicated region
        $region45: #{tpu_custom_call.1} parent=43 // pred_check
          %p352 = pneg %p112
        $region46: #{tpu_custom_call.1} parent=43 // pred_check_branch
          %354 = sbr.rel (%p352) target = $region48
        $region47: #{tpu_custom_call.1} parent=43 // pred_region
          %s355 = sand.u32 %s97, 1
          %s356 = scalar_lea.sflag [#allocation4], %s355
          %s357 = sand.u32 %s97, 1
          %s358 = scalar_lea.vmem [#allocation5], %s357
          %360 = dma.done %s356, 16
        $region48: #{tpu_custom_call.1} parent=43 // pred_fallthru
          _
      $region44: #{tpu_custom_call.1} parent=5 // pred_fallthru
        _
    $region6: #{tpu_custom_call.1} parent=1 // loop_footer
      %s19 = sadd.s32 1, %s15
    $region7: #{tpu_custom_call.1} parent=1 // loop_footer_branch
      %14 = sbr.rel target = $region3
    $region8: #{tpu_custom_call.1} parent=1 // loop_exit
      _
    %361 = vsyncpa [#allocation3], 1
    %s362 = scalar_lea.sflag [#allocation3], 1
    %363 = vsyncpa %s362, 1
    %364 = vsyncpa [#allocation4], 1
    %s365 = scalar_lea.sflag [#allocation4], 1
    %366 = vsyncpa %s365, 1

</llo_original>
